<compile_context>
chip_gen: v7x
topology: tpu7x:2x2x1
jax: 0.10.0
libtpu: 0.0.40
codegen_flags: <defaults>
</compile_context>

<pallas_src>
import functools

import jax
import jax.numpy as jnp
from jax.experimental import pallas as pl
from jax.experimental.pallas import tpu as pltpu


def _round_up(x, m):
    return ((x + m - 1) // m) * m


def _pad2d(a, rows, cols):
    return jnp.pad(a, ((0, rows - a.shape[0]), (0, cols - a.shape[1])))


def _vmem_budget_and_limit():
    """Per-generation VMEM budget (for tile sizing) and compiler vmem limit."""
    try:
        cap = int(pltpu.get_tpu_info().vmem_capacity_bytes)
    except Exception:
        cap = 64 * 1024 * 1024  # conservative default (v7x: 64 MiB per TC)
    if cap < (16 << 20):
        cap = 64 * 1024 * 1024
    budget = (cap * 3) // 4  # ~48 MiB on v7x, ~96 MiB on v5e/v6e
    limit = min(cap - (2 << 20), budget + (16 << 20))
    return budget, limit


def _divisor_tiles(n, lo=64, hi=4096):
    """Power-of-two divisors of n in [lo, hi], ascending."""
    out = []
    c = lo
    while c <= min(n, hi):
        if n % c == 0:
            out.append(c)
        c *= 2
    if not out:
        out = [n]
    return out


# --------------------------------------------------------------------------
# Kernel 1: H = X @ W  (feature transform)
# --------------------------------------------------------------------------
def _xw_kernel(x_ref, w_ref, h_ref):
    h_ref[...] = jnp.dot(
        x_ref[...], w_ref[...], preferred_element_type=jnp.float32
    ).astype(h_ref.dtype)


def xw_matmul(x_pad, w_pad, *, force_tiled=False):
    """H = X @ W. Single un-gridded block when it fits VMEM, else row-tiled."""
    n_pad, f_in_pad = x_pad.shape
    f_out_pad = w_pad.shape[1]
    budget, vmem_limit = _vmem_budget_and_limit()
    out_shape = jax.ShapeDtypeStruct((n_pad, f_out_pad), jnp.bfloat16)
    cost = pl.CostEstimate(
        flops=2 * n_pad * f_in_pad * f_out_pad,
        transcendentals=0,
        bytes_accessed=(x_pad.size + w_pad.size + n_pad * f_out_pad) * 2,
    )

    single_block_bytes = 2 * (x_pad.size + w_pad.size + n_pad * f_out_pad)
    if not force_tiled and single_block_bytes <= budget // 2:
        # Whole problem in VMEM: one invocation, no grid-step overhead.
        return pl.pallas_call(
            _xw_kernel,
            out_shape=out_shape,
            compiler_params=pltpu.CompilerParams(vmem_limit_bytes=vmem_limit),
            cost_estimate=cost,
        )(x_pad, w_pad)

    # Row-tiled fallback for large graphs (W resident, X/H streamed).
    tm = 64
    for cand in _divisor_tiles(n_pad, hi=2048):
        need = (2 * cand * (f_in_pad + f_out_pad) * 2
                + 2 * f_in_pad * f_out_pad * 2)
        if need <= budget and n_pad // cand >= 2:  # >=2 tiles: v7x megacore
            tm = cand
    return pl.pallas_call(
        _xw_kernel,
        out_shape=out_shape,
        grid_spec=pltpu.PrefetchScalarGridSpec(
            num_scalar_prefetch=0,
            grid=(n_pad // tm,),
            in_specs=[
                pl.BlockSpec((tm, f_in_pad), lambda i: (i, 0)),
                pl.BlockSpec((f_in_pad, f_out_pad), lambda i: (0, 0)),
            ],
            out_specs=pl.BlockSpec((tm, f_out_pad), lambda i: (i, 0)),
        ),
        compiler_params=pltpu.CompilerParams(
            dimension_semantics=("parallel",),
            vmem_limit_bytes=vmem_limit,
        ),
        cost_estimate=cost,
    )(x_pad, w_pad)


# --------------------------------------------------------------------------
# Kernel 2: out = act(A_hat @ H + b)
# --------------------------------------------------------------------------
def _agg_resident_kernel(a_ref, h_ref, b_ref, o_ref, *, activation):
    # H fully resident in VMEM: one dot per row tile, no accumulator needed.
    out = jnp.dot(a_ref[...], h_ref[...], preferred_element_type=jnp.float32)
    out = out + b_ref[...]
    if activation == "tanh":
        out = jnp.tanh(out)
    elif activation == "relu":
        out = jnp.maximum(out, 0.0)
    o_ref[...] = out.astype(o_ref.dtype)


def _agg_ktiled_kernel(a_ref, h_ref, b_ref, o_ref, acc_ref, *, activation):
    k = pl.program_id(1)

    @pl.when(k == 0)
    def _():
        acc_ref[...] = jnp.zeros_like(acc_ref)

    acc_ref[...] += jnp.dot(
        a_ref[...], h_ref[...], preferred_element_type=jnp.float32
    )

    @pl.when(k == pl.num_programs(1) - 1)
    def _():
        out = acc_ref[...] + b_ref[...]
        if activation == "tanh":
            out = jnp.tanh(out)
        elif activation == "relu":
            out = jnp.maximum(out, 0.0)
        o_ref[...] = out.astype(o_ref.dtype)


def aggregate(a_pad, h, b_pad, activation, out_dtype, *, force_ktiled=False):
    n_pad = a_pad.shape[0]
    f_out_pad = h.shape[1]
    out_isize = jnp.dtype(out_dtype).itemsize
    budget, vmem_limit = _vmem_budget_and_limit()
    out_shape = jax.ShapeDtypeStruct((n_pad, f_out_pad), out_dtype)
    n_trans = (n_pad * f_out_pad) if activation == "tanh" else 0

    # ---- Preferred path: full H resident in VMEM, no reduction grid axis ----
    tm_res = None
    if not force_ktiled:
        for cand in _divisor_tiles(n_pad, hi=2048):
            need = (3 * cand * n_pad * 2            # A_hat tile (up to 3 bufs)
                    + 2 * n_pad * f_out_pad * 2     # resident H (bf16)
                    + 2 * f_out_pad * 4             # bias
                    + 2 * cand * f_out_pad * out_isize)  # output tile
            if need <= budget and n_pad // cand >= 2:  # >=2 tiles: v7x megacore
                tm_res = cand

    if tm_res is not None:
        tm = tm_res
        n_tiles = n_pad // tm
        if n_tiles >= 3:
            # deepen buffering on the dominant A_hat HBM stream
            a_spec = pl.BlockSpec((tm, n_pad), lambda i: (i, 0),
                                  pipeline_mode=pl.Buffered(3))
        else:
            a_spec = pl.BlockSpec((tm, n_pad), lambda i: (i, 0))
        cost = pl.CostEstimate(
            flops=2 * n_pad * n_pad * f_out_pad,
            transcendentals=n_trans,
            bytes_accessed=(a_pad.size * 2 + h.size * 2 + b_pad.size * 4
                            + n_pad * f_out_pad * out_isize),
        )
        kernel = functools.partial(_agg_resident_kernel, activation=activation)
        return pl.pallas_call(
            kernel,
            out_shape=out_shape,
            grid_spec=pltpu.PrefetchScalarGridSpec(
                num_scalar_prefetch=0,
                grid=(n_tiles,),
                in_specs=[
                    a_spec,                                            # A_hat row tile
                    pl.BlockSpec((n_pad, f_out_pad), lambda i: (0, 0)),  # H resident
                    pl.BlockSpec((1, f_out_pad), lambda i: (0, 0)),      # bias
                ],
                out_specs=pl.BlockSpec((tm, f_out_pad), lambda i: (i, 0)),
            ),
            compiler_params=pltpu.CompilerParams(
                dimension_semantics=("parallel",),
                vmem_limit_bytes=vmem_limit,
            ),
            cost_estimate=cost,
        )(a_pad, h, b_pad)

    # ---- Fallback: K-tiled reduction with f32 VMEM accumulator ----
    best = None
    for tm_c in _divisor_tiles(n_pad, hi=1024):
        for tk_c in _divisor_tiles(n_pad, lo=128, hi=4096):
            need = (3 * tm_c * tk_c * 2             # A_hat tile (up to 3 bufs)
                    + 2 * tk_c * f_out_pad * 2      # H tile
                    + 2 * f_out_pad * 4             # bias
                    + tm_c * f_out_pad * 4          # f32 accumulator
                    + 2 * tm_c * f_out_pad * out_isize)
            if need > budget:
                continue
            steps = (n_pad // tm_c) * (n_pad // tk_c)
            score = (n_pad // tm_c >= 2, -steps, tk_c, tm_c)
            if best is None or score > best[0]:
                best = (score, tm_c, tk_c)
    if best is None:
        tm, tk = 64, 128  # minimal legal tiling
    else:
        tm, tk = best[1], best[2]
    grid = (n_pad // tm, n_pad // tk)

    if grid[0] * grid[1] >= 3:
        a_spec = pl.BlockSpec((tm, tk), lambda i, k: (i, k),
                              pipeline_mode=pl.Buffered(3))
    else:
        a_spec = pl.BlockSpec((tm, tk), lambda i, k: (i, k))

    cost = pl.CostEstimate(
        flops=2 * n_pad * n_pad * f_out_pad,
        transcendentals=n_trans,
        bytes_accessed=(a_pad.size * 2
                        + h.size * 2 * (n_pad // tm)   # H re-read per row tile
                        + b_pad.size * 4
                        + n_pad * f_out_pad * out_isize),
    )
    kernel = functools.partial(_agg_ktiled_kernel, activation=activation)
    return pl.pallas_call(
        kernel,
        out_shape=out_shape,
        grid_spec=pltpu.PrefetchScalarGridSpec(
            num_scalar_prefetch=0,
            grid=grid,
            in_specs=[
                a_spec,                                                 # A_hat tile
                pl.BlockSpec((tk, f_out_pad), lambda i, k: (k, 0)),     # H tile
                pl.BlockSpec((1, f_out_pad), lambda i, k: (0, 0)),      # bias
            ],
            out_specs=pl.BlockSpec((tm, f_out_pad), lambda i, k: (i, 0)),
            scratch_shapes=[pltpu.VMEM((tm, f_out_pad), jnp.float32)],
        ),
        compiler_params=pltpu.CompilerParams(
            dimension_semantics=("parallel", "arbitrary"),
            vmem_limit_bytes=vmem_limit,
        ),
        cost_estimate=cost,
    )(a_pad, h, b_pad)


# --------------------------------------------------------------------------
# Glue: dense symmetric-normalized adjacency from edge_index (gcn_norm)
# --------------------------------------------------------------------------
def build_norm_adj(edge_index, num_nodes):
    src = edge_index[0]
    dst = edge_index[1]
    adj = jnp.zeros((num_nodes, num_nodes), jnp.float32)
    # message flows source -> target: A[target, source] += 1
    adj = adj.at[dst, src].add(1.0)
    # add_remaining_self_loops: only add a self-loop where none already exists
    diag = jnp.diagonal(adj)
    adj = adj + jnp.diag(jnp.where(diag > 0.0, 0.0, 1.0))
    deg = adj.sum(axis=1)
    d_inv_sqrt = jax.lax.rsqrt(jnp.maximum(deg, 1e-12))
    return adj * d_inv_sqrt[:, None] * d_inv_sqrt[None, :]


# --------------------------------------------------------------------------
# GCN model (mirrors the PyTorch GCN module's layer construction)
# --------------------------------------------------------------------------
def init_gcn_params(key, hidden_channels, n_layers, n_features, n_classes):
    dims = []
    for i in range(n_layers):
        if n_layers == 1:
            dims.append((n_features, n_classes))
        elif i == 0:
            dims.append((n_features, hidden_channels))
        elif i == n_layers - 1:
            dims.append((hidden_channels, n_classes))
        else:
            dims.append((hidden_channels, hidden_channels))

    params = []
    for (f_in, f_out) in dims:
        key, wk = jax.random.split(key)
        # glorot-style deterministic init; bias zero (matches GCNConv reset)
        scale = jnp.sqrt(6.0 / (f_in + f_out))
        w = jax.random.uniform(wk, (f_in, f_out), jnp.float32, -scale, scale)
        b = jnp.zeros((f_out,), jnp.float32)
        params.append((w, b))
    return params


def gcn_forward(params, x, edge_index, activation, *, force_fallback=False):
    n, f_in = x.shape
    n_pad = _round_up(max(n, 8), 128)
    f_in_pad = _round_up(f_in, 128)

    a_hat = build_norm_adj(edge_index, n)
    a_pad = _pad2d(a_hat, n_pad, n_pad).astype(jnp.bfloat16)
    h = _pad2d(x, n_pad, f_in_pad).astype(jnp.bfloat16)

    n_layers = len(params)
    for li, (w, b) in enumerate(params):
        last = li == n_layers - 1
        f_i, f_o = w.shape
        f_i_pad = _round_up(f_i, 128)
        f_o_pad = _round_up(f_o, 128)
        assert h.shape[1] == f_i_pad, "padded feature widths must chain"

        w_pad = _pad2d(w, f_i_pad, f_o_pad).astype(jnp.bfloat16)
        b_pad = jnp.pad(b, (0, f_o_pad - f_o)).reshape(1, f_o_pad).astype(jnp.float32)

        h_xw = xw_matmul(h, w_pad, force_tiled=force_fallback)     # [n_pad, f_o_pad] bf16
        act = None if last else activation
        out_dtype = jnp.float32 if last else jnp.bfloat16
        h = aggregate(a_pad, h_xw, b_pad, act, out_dtype,
                      force_ktiled=force_fallback)                 # [n_pad, f_o_pad]

    n_classes = params[-1][0].shape[1]
    return h[:n, :n_classes]


# --------------------------------------------------------------------------
# Reference (pure JAX) with matching bf16 quantization points
# --------------------------------------------------------------------------
def _q(v):
    return v.astype(jnp.bfloat16).astype(jnp.float32)


def gcn_forward_ref(params, x, edge_index, activation):
    a = _q(build_norm_adj(edge_index, x.shape[0]))
    h = _q(x)
    n_layers = len(params)
    for li, (w, b) in enumerate(params):
        last = li == n_layers - 1
        xw = _q(h @ _q(w))
        out = a @ xw + b[None, :]
        if not last:
            out = jnp.tanh(out) if activation == "tanh" else jnp.maximum(out, 0.0)
            h = _q(out)
        else:
            h = out
    return h


if __name__ == "__main__":
    key = jax.random.PRNGKey(0)

    # Small synthetic graph
    n_nodes = 16
    n_features = 8
    hidden_channels = 32
    n_classes = 4
    n_layers = 3
    n_edges = 40

    key, kx, ke, kp = jax.random.split(key, 4)
    x = jax.random.normal(kx, (n_nodes, n_features), jnp.float32)
    edge_index = jax.random.randint(ke, (2, n_edges), 0, n_nodes, jnp.int32)

    params = init_gcn_params(kp, hidden_channels, n_layers, n_features, n_classes)

    # Fast path: resident-H aggregation + single-block X@W (relu).
    out = gcn_forward(params, x, edge_index, "relu")
    out = jax.block_until_ready(out)
    ref = gcn_forward_ref(params, x, edge_index, "relu")
    assert out.shape == (n_nodes, n_classes)
    err = float(jnp.max(jnp.abs(out - ref)))
    assert jnp.allclose(out, ref, atol=1e-2, rtol=1e-2), f"max abs err {err}"

    # Large-graph fallback path coverage: K-tiled aggregation + tiled X@W (tanh).
    out_fb = gcn_forward(params, x, edge_index, "tanh", force_fallback=True)
    out_fb = jax.block_until_ready(out_fb)
    ref_fb = gcn_forward_ref(params, x, edge_index, "tanh")
    err_fb = float(jnp.max(jnp.abs(out_fb - ref_fb)))
    assert jnp.allclose(out_fb, ref_fb, atol=1e-2, rtol=1e-2), f"max abs err {err_fb}"

    print("KERNEL_OK")
</pallas_src>

<mosaic_0001>
module attributes {stable_mosaic.version = 11 : i64} {
  func.func @_xw_kernel(%arg0: memref<128x128xbf16, #tpu.memory_space<vmem>>, %arg1: memref<128x128xbf16, #tpu.memory_space<vmem>>, %arg2: memref<128x128xbf16, #tpu.memory_space<vmem>>) attributes {dimension_semantics = [], scalar_prefetch = 0 : i64, scratch_operands = 0 : i64, tpu.core_type = #tpu.core_type<tc>} {
    %c0 = arith.constant 0 : index
    %c0_0 = arith.constant 0 : index
    %0 = vector.load %arg0[%c0, %c0_0] : memref<128x128xbf16, #tpu.memory_space<vmem>>, vector<128x128xbf16>
    %c0_1 = arith.constant 0 : index
    %c0_2 = arith.constant 0 : index
    %1 = vector.load %arg1[%c0_1, %c0_2] : memref<128x128xbf16, #tpu.memory_space<vmem>>, vector<128x128xbf16>
    %cst = arith.constant dense<0.000000e+00> : vector<128x128xf32>
    %2 = tpu.matmul %0, %1, %cst {dimension_numbers = #tpu.dot_dimension_numbers<[1], [0], [0], [1], [0, 0, 1, 1], [], []>} : vector<128x128xbf16>, vector<128x128xbf16>, vector<128x128xf32> -> vector<128x128xf32>
    %3 = arith.truncf %2 : vector<128x128xf32> to vector<128x128xbf16>
    %c0_3 = arith.constant 0 : index
    %c0_4 = arith.constant 0 : index
    %4 = vector.load %arg2[%c0_3, %c0_4] : memref<128x128xbf16, #tpu.memory_space<vmem>>, vector<128x128xbf16>
    tpu.vector_store %arg2[%c0_3, %c0_4], %3 {strides = array<i32>} : memref<128x128xbf16, #tpu.memory_space<vmem>>, vector<128x128xbf16>,
    return
  }
}

</mosaic_0001>

<llo_original>
// kernel: tpu_custom_call.1
$region0: #{tpu_custom_call.1}
  #allocation0 [shape = 'u32[]', space=smem, size = 0x4, offset = 0x4, fixed_abs, tag = 'smem constant byte address 0x4 - core index']
  #allocation1 [shape = 'u32[144,128]{1,0:T(1,128)}', space=vmem, size = 0x12000, scoped, tag = 'internal scratch']
  %s0 = inlined_call_operand.hbm [shape: bf16[128,128], index: 0, kind: input, shape index: {}]
  %s1 = inlined_call_operand.hbm [shape: bf16[128,128], index: 1, kind: input, shape index: {}]
  %s2 = inlined_call_operand.hbm [shape: bf16[128,128], index: 2, kind: output, shape index: {}]
  %s3 = sld [smem:[#allocation0]]
  $region26: #{tpu_custom_call.1} parent=0
    _
  %s5 = ssub.s32 1, %s3
  %s6 = scalar_select 0, %s5, %s3
  $region1: #{tpu_custom_call.1} parent=0
    #allocation2 [shape = 'u8[32768]{0}', space=vmem, size = 0x8000, scoped, tag = 'input window, operand 0, single buffered']
    #allocation3 [shape = 's32[1]{0}', space=sflag, size = 0x4, scoped, tag = 'scoped memory for tpu_custom_call.1']
    #allocation4 [shape = 's32[1]{0}', space=sflag, size = 0x4, scoped, tag = 'scoped memory for tpu_custom_call.1']
    #allocation5 [shape = 'u8[32768]{0}', space=vmem, size = 0x8000, scoped, tag = 'input window, operand 1, single buffered']
    #allocation6 [shape = 's32[1]{0}', space=sflag, size = 0x4, scoped, tag = 'scoped memory for tpu_custom_call.1']
    #allocation7 [shape = 'u8[32768]{0}', space=vmem, size = 0x8000, scoped, tag = 'output window, operand 0, single buffered']
    %7 = vsyncpa [#allocation3], 0
    %8 = vsyncpa [#allocation6], 0
    %9 = vsyncpa [#allocation4], 0
    // Predicated region
    $region2: #{tpu_custom_call.1} parent=1 // pred_check
      _
    $region3: #{tpu_custom_call.1} parent=1 // pred_check_branch
      %11 = sbr.rel (0) target = $region5
    $region4: #{tpu_custom_call.1} parent=1 // pred_region
      %s13 = ssub.s32 1024, 1024
      %14 = vsyncadd [#allocation3], %s13
      %s15 = sshll.u32 [#allocation2], 4
      %s16 = int_to_ptr.vmem [resolvable:$true] %s15
      %21 = dma.hbm_to_vmem [thread:$0]  %s0, 1024, %s16, [#allocation3], 64, 64, 4
    $region5: #{tpu_custom_call.1} parent=1 // pred_fallthru
      _
    // Predicated region
    $region6: #{tpu_custom_call.1} parent=1 // pred_check
      _
    $region7: #{tpu_custom_call.1} parent=1 // pred_check_branch
      %23 = sbr.rel (0) target = $region9
    $region8: #{tpu_custom_call.1} parent=1 // pred_region
      %s25 = ssub.s32 1024, 1024
      %26 = vsyncadd [#allocation6], %s25
      %s27 = sshll.u32 [#allocation5], 4
      %s28 = int_to_ptr.vmem [resolvable:$true] %s27
      %33 = dma.hbm_to_vmem [thread:$0]  %s1, 1024, %s28, [#allocation6], 64, 64, 4
    $region9: #{tpu_custom_call.1} parent=1 // pred_fallthru
      _
    // Predicated region
    $region10: #{tpu_custom_call.1} parent=1 // pred_check
      _
    $region11: #{tpu_custom_call.1} parent=1 // pred_check_branch
      %35 = sbr.rel (0) target = $region13
    $region12: #{tpu_custom_call.1} parent=1 // pred_region
      %36 = dma.done [#allocation3], 1024
    $region13: #{tpu_custom_call.1} parent=1 // pred_fallthru
      _
    // Predicated region
    $region14: #{tpu_custom_call.1} parent=1 // pred_check
      _
    $region15: #{tpu_custom_call.1} parent=1 // pred_check_branch
      %38 = sbr.rel (0) target = $region17
    $region16: #{tpu_custom_call.1} parent=1 // pred_region
      %39 = dma.done [#allocation6], 1024
    $region17: #{tpu_custom_call.1} parent=1 // pred_fallthru
      _
    %v41 = vld [vmem:[#allocation2] sm:$0xf]
    %v42 = vld [vmem:[#allocation2 + $0x4] sm:$0xf]
    %v43 = vld [vmem:[#allocation2 + $0x8] sm:$0xf]
    %v44 = vld [vmem:[#allocation2 + $0xc] sm:$0xf]
    %v45 = vld [vmem:[#allocation2 + $0x10] sm:$0xf]
    %v46 = vld [vmem:[#allocation2 + $0x14] sm:$0xf]
    %v47 = vld [vmem:[#allocation2 + $0x18] sm:$0xf]
    %v48 = vld [vmem:[#allocation2 + $0x1c] sm:$0xf]
    %v49 = vld [vmem:[#allocation2 + $0x20] sm:$0xf]
    %v50 = vld [vmem:[#allocation2 + $0x24] sm:$0xf]
    %v51 = vld [vmem:[#allocation2 + $0x28] sm:$0xf]
    %v52 = vld [vmem:[#allocation2 + $0x2c] sm:$0xf]
    %v53 = vld [vmem:[#allocation2 + $0x30] sm:$0xf]
    %v54 = vld [vmem:[#allocation2 + $0x34] sm:$0xf]
    %v55 = vld [vmem:[#allocation2 + $0x38] sm:$0xf]
    %v56 = vld [vmem:[#allocation2 + $0x3c] sm:$0xf]
    %v57 = vld [vmem:[#allocation5] sm:$0xf]
    %v58 = vld [vmem:[#allocation5 + $0x4] sm:$0xf]
    %v59 = vld [vmem:[#allocation5 + $0x8] sm:$0xf]
    %v60 = vld [vmem:[#allocation5 + $0xc] sm:$0xf]
    %v61 = vld [vmem:[#allocation5 + $0x10] sm:$0xf]
    %v62 = vld [vmem:[#allocation5 + $0x14] sm:$0xf]
    %v63 = vld [vmem:[#allocation5 + $0x18] sm:$0xf]
    %v64 = vld [vmem:[#allocation5 + $0x1c] sm:$0xf]
    %v65 = vld [vmem:[#allocation5 + $0x20] sm:$0xf]
    %v66 = vld [vmem:[#allocation5 + $0x24] sm:$0xf]
    %v67 = vld [vmem:[#allocation5 + $0x28] sm:$0xf]
    %v68 = vld [vmem:[#allocation5 + $0x2c] sm:$0xf]
    %v69 = vld [vmem:[#allocation5 + $0x30] sm:$0xf]
    %v70 = vld [vmem:[#allocation5 + $0x34] sm:$0xf]
    %v71 = vld [vmem:[#allocation5 + $0x38] sm:$0xf]
    %v72 = vld [vmem:[#allocation5 + $0x3c] sm:$0xf]
    %v89 = vunpack.c.l.b16 %v41
    %v90 = vunpack.c.l.b16 %v42
    %v91 = vunpack.c.l.b16 %v43
    %v92 = vunpack.c.l.b16 %v44
    %v93 = vunpack.c.l.b16 %v45
    %v94 = vunpack.c.l.b16 %v46
    %v95 = vunpack.c.l.b16 %v47
    %v96 = vunpack.c.l.b16 %v48
    %v97 = vunpack.c.l.b16 %v49
    %v98 = vunpack.c.l.b16 %v50
    %v99 = vunpack.c.l.b16 %v51
    %v100 = vunpack.c.l.b16 %v52
    %v101 = vunpack.c.l.b16 %v53
    %v102 = vunpack.c.l.b16 %v54
    %v103 = vunpack.c.l.b16 %v55
    %v104 = vunpack.c.l.b16 %v56
    %v105 = vpack.c.b16 %v90, %v89
    %v106 = vpack.c.b16 %v92, %v91
    %v107 = vpack.c.b16 %v94, %v93
    %v108 = vpack.c.b16 %v96, %v95
    %v109 = vpack.c.b16 %v98, %v97
    %v110 = vpack.c.b16 %v100, %v99
    %v111 = vpack.c.b16 %v102, %v101
    %v112 = vpack.c.b16 %v104, %v103
    %v137 = vunpack.c.l.b16 %v57
    %v138 = vunpack.c.l.b16 %v58
    %v139 = vunpack.c.l.b16 %v59
    %v140 = vunpack.c.l.b16 %v60
    %v141 = vunpack.c.l.b16 %v61
    %v142 = vunpack.c.l.b16 %v62
    %v143 = vunpack.c.l.b16 %v63
    %v144 = vunpack.c.l.b16 %v64
    %v145 = vunpack.c.l.b16 %v65
    %v146 = vunpack.c.l.b16 %v66
    %v147 = vunpack.c.l.b16 %v67
    %v148 = vunpack.c.l.b16 %v68
    %v149 = vunpack.c.l.b16 %v69
    %v150 = vunpack.c.l.b16 %v70
    %v151 = vunpack.c.l.b16 %v71
    %v152 = vunpack.c.l.b16 %v72
    %v153 = vpack.c.b16 %v138, %v137
    %v154 = vpack.c.b16 %v140, %v139
    %v155 = vpack.c.b16 %v142, %v141
    %v156 = vpack.c.b16 %v144, %v143
    %v157 = vpack.c.b16 %v146, %v145
    %v158 = vpack.c.b16 %v148, %v147
    %v159 = vpack.c.b16 %v150, %v149
    %v160 = vpack.c.b16 %v152, %v151
    %169 = vmatprep.subr.bf16.mxu0 0
    %170 = vmatpush1.bf16.msra.mxu0 %v153
    %171 = vmatprep.subr.bf16.mxu0 0
    %172 = vmatpush1.bf16.msra.mxu0 %v154
    %173 = vmatprep.subr.bf16.mxu0 0
    %174 = vmatpush1.bf16.msra.mxu0 %v155
    %175 = vmatprep.subr.bf16.mxu0 0
    %176 = vmatpush1.bf16.msra.mxu0 %v156
    %177 = vmatprep.subr.bf16.mxu0 0
    %178 = vmatpush1.bf16.msra.mxu0 %v157
    %179 = vmatprep.subr.bf16.mxu0 0
    %180 = vmatpush1.bf16.msra.mxu0 %v158
    %181 = vmatprep.subr.bf16.mxu0 0
    %182 = vmatpush1.bf16.msra.mxu0 %v159
    %183 = vmatprep.subr.bf16.mxu0 0
    %184 = vmatpush1.bf16.msra.mxu0 %v160
    %185 = vmatprep.subr.bf16.mxu0 0
    %186 = vmatpush1.bf16.msra.mxu0 0
    %187 = vmatprep.subr.bf16.mxu0 0
    %188 = vmatpush1.bf16.msra.mxu0 0
    %189 = vmatprep.subr.bf16.mxu0 0
    %190 = vmatpush1.bf16.msra.mxu0 0
    %191 = vmatprep.subr.bf16.mxu0 0
    %192 = vmatpush1.bf16.msra.mxu0 0
    %193 = vmatprep.subr.bf16.mxu0 0
    %194 = vmatpush1.bf16.msra.mxu0 0
    %195 = vmatprep.subr.bf16.mxu0 0
    %196 = vmatpush1.bf16.msra.mxu0 0
    %197 = vmatprep.subr.bf16.mxu0 0
    %198 = vmatpush1.bf16.msra.mxu0 0
    %199 = vmatprep.subr.bf16.mxu0 0
    %200 = vmatpush1.bf16.msra.mxu0 0
    %201 = vmatprep.mubr.bf16.mxu0 0
    %202 = vmatmul.mubr.bf16.gmra.mrb[0].mxu0 %v105
    %v203 = vpop.f32.mrb[0].mxu0
    %v204 = vadd.f32 0.0, %v203
    %v205 = vpop.f32.mrb[0].mxu0
    %v206 = vpop.f32.mrb[0].mxu0
    %v207 = vadd.f32 0.0, %v206
    %v208 = vpop.f32.mrb[0].mxu0
    %209 = vmatprep.mubr.bf16.mxu0 0
    %210 = vmatmul.mubr.bf16.gmra.mrb[0].mxu0 %v106
    %v211 = vpop.f32.mrb[0].mxu0
    %v212 = vadd.f32 0.0, %v211
    %v213 = vpop.f32.mrb[0].mxu0
    %v214 = vpop.f32.mrb[0].mxu0
    %v215 = vadd.f32 0.0, %v214
    %v216 = vpop.f32.mrb[0].mxu0
    %217 = vmatprep.mubr.bf16.mxu0 0
    %218 = vmatmul.mubr.bf16.gmra.mrb[0].mxu0 %v107
    %v219 = vpop.f32.mrb[0].mxu0
    %v220 = vadd.f32 0.0, %v219
    %v221 = vpop.f32.mrb[0].mxu0
    %v222 = vpop.f32.mrb[0].mxu0
    %v223 = vadd.f32 0.0, %v222
    %v224 = vpop.f32.mrb[0].mxu0
    %225 = vmatprep.mubr.bf16.mxu0 0
    %226 = vmatmul.mubr.bf16.gmra.mrb[0].mxu0 %v108
    %v227 = vpop.f32.mrb[0].mxu0
    %v228 = vadd.f32 0.0, %v227
    %v229 = vpop.f32.mrb[0].mxu0
    %v230 = vpop.f32.mrb[0].mxu0
    %v231 = vadd.f32 0.0, %v230
    %v232 = vpop.f32.mrb[0].mxu0
    %233 = vmatprep.mubr.bf16.mxu0 0
    %234 = vmatmul.mubr.bf16.gmra.mrb[0].mxu0 %v109
    %v235 = vpop.f32.mrb[0].mxu0
    %v236 = vadd.f32 0.0, %v235
    %v237 = vpop.f32.mrb[0].mxu0
    %v238 = vpop.f32.mrb[0].mxu0
    %v239 = vadd.f32 0.0, %v238
    %v240 = vpop.f32.mrb[0].mxu0
    %241 = vmatprep.mubr.bf16.mxu0 0
    %242 = vmatmul.mubr.bf16.gmra.mrb[0].mxu0 %v110
    %v243 = vpop.f32.mrb[0].mxu0
    %v244 = vadd.f32 0.0, %v243
    %v245 = vpop.f32.mrb[0].mxu0
    %v246 = vpop.f32.mrb[0].mxu0
    %v247 = vadd.f32 0.0, %v246
    %v248 = vpop.f32.mrb[0].mxu0
    %249 = vmatprep.mubr.bf16.mxu0 0
    %250 = vmatmul.mubr.bf16.gmra.mrb[0].mxu0 %v111
    %v251 = vpop.f32.mrb[0].mxu0
    %v252 = vadd.f32 0.0, %v251
    %v253 = vpop.f32.mrb[0].mxu0
    %v254 = vpop.f32.mrb[0].mxu0
    %v255 = vadd.f32 0.0, %v254
    %v256 = vpop.f32.mrb[0].mxu0
    %257 = vmatprep.mubr.bf16.mxu0 0
    %258 = vmatmul.mubr.bf16.gmra.mrb[0].mxu0 %v112
    %v259 = vpop.f32.mrb[0].mxu0
    %v260 = vadd.f32 0.0, %v259
    %v261 = vpop.f32.mrb[0].mxu0
    %v262 = vpop.f32.mrb[0].mxu0
    %v263 = vadd.f32 0.0, %v262
    %v264 = vpop.f32.mrb[0].mxu0
    %265 = vdwg.mxu0
    %v266 = vpack.c.bf16 %v207, %v204
    %v267 = vpack.c.bf16 %v215, %v212
    %v268 = vpack.c.bf16 %v223, %v220
    %v269 = vpack.c.bf16 %v231, %v228
    %v270 = vpack.c.bf16 %v239, %v236
    %v271 = vpack.c.bf16 %v247, %v244
    %v272 = vpack.c.bf16 %v255, %v252
    %v273 = vpack.c.bf16 %v263, %v260
    %v282 = vunpack.c.l.b16 %v266
    %v283 = vunpack.c.h.b16 %v266
    %v284 = vunpack.c.l.b16 %v267
    %v285 = vunpack.c.h.b16 %v267
    %v286 = vunpack.c.l.b16 %v268
    %v287 = vunpack.c.h.b16 %v268
    %v288 = vunpack.c.l.b16 %v269
    %v289 = vunpack.c.h.b16 %v269
    %v290 = vunpack.c.l.b16 %v270
    %v291 = vunpack.c.h.b16 %v270
    %v292 = vunpack.c.l.b16 %v271
    %v293 = vunpack.c.h.b16 %v271
    %v294 = vunpack.c.l.b16 %v272
    %v295 = vunpack.c.h.b16 %v272
    %v296 = vunpack.c.l.b16 %v273
    %v297 = vunpack.c.h.b16 %v273
    %v298 = vpack.c.b16 %v282, %v282
    %v299 = vpack.c.b16 %v283, %v283
    %v300 = vpack.c.b16 %v284, %v284
    %v301 = vpack.c.b16 %v285, %v285
    %v302 = vpack.c.b16 %v286, %v286
    %v303 = vpack.c.b16 %v287, %v287
    %v304 = vpack.c.b16 %v288, %v288
    %v305 = vpack.c.b16 %v289, %v289
    %v306 = vpack.c.b16 %v290, %v290
    %v307 = vpack.c.b16 %v291, %v291
    %v308 = vpack.c.b16 %v292, %v292
    %v309 = vpack.c.b16 %v293, %v293
    %v310 = vpack.c.b16 %v294, %v294
    %v311 = vpack.c.b16 %v295, %v295
    %v312 = vpack.c.b16 %v296, %v296
    %v313 = vpack.c.b16 %v297, %v297
    %330 = vst [vmem:[#allocation7] sm:$0xf] %v298
    %331 = vst [vmem:[#allocation7 + $0x4] sm:$0xf] %v299
    %332 = vst [vmem:[#allocation7 + $0x8] sm:$0xf] %v300
    %333 = vst [vmem:[#allocation7 + $0xc] sm:$0xf] %v301
    %334 = vst [vmem:[#allocation7 + $0x10] sm:$0xf] %v302
    %335 = vst [vmem:[#allocation7 + $0x14] sm:$0xf] %v303
    %336 = vst [vmem:[#allocation7 + $0x18] sm:$0xf] %v304
    %337 = vst [vmem:[#allocation7 + $0x1c] sm:$0xf] %v305
    %338 = vst [vmem:[#allocation7 + $0x20] sm:$0xf] %v306
    %339 = vst [vmem:[#allocation7 + $0x24] sm:$0xf] %v307
    %340 = vst [vmem:[#allocation7 + $0x28] sm:$0xf] %v308
    %341 = vst [vmem:[#allocation7 + $0x2c] sm:$0xf] %v309
    %342 = vst [vmem:[#allocation7 + $0x30] sm:$0xf] %v310
    %343 = vst [vmem:[#allocation7 + $0x34] sm:$0xf] %v311
    %344 = vst [vmem:[#allocation7 + $0x38] sm:$0xf] %v312
    %345 = vst [vmem:[#allocation7 + $0x3c] sm:$0xf] %v313
    // Predicated region
    $region18: #{tpu_custom_call.1} parent=1 // pred_check
      _
    $region19: #{tpu_custom_call.1} parent=1 // pred_check_branch
      %347 = sbr.rel (0) target = $region21
    $region20: #{tpu_custom_call.1} parent=1 // pred_region
      %s349 = ssub.s32 1024, 1024
      %350 = vsyncadd [#allocation4], %s349
      %s351 = sshll.u32 [#allocation7], 4
      %s352 = int_to_ptr.vmem [resolvable:$true] %s351
      %357 = dma.vmem_to_hbm [thread:$0]  %s352, 1024, %s2, [#allocation4], 64, 64, 4
    $region21: #{tpu_custom_call.1} parent=1 // pred_fallthru
      _
    // Predicated region
    $region22: #{tpu_custom_call.1} parent=1 // pred_check
      _
    $region23: #{tpu_custom_call.1} parent=1 // pred_check_branch
      %359 = sbr.rel (0) target = $region25
    $region24: #{tpu_custom_call.1} parent=1 // pred_region
      %360 = dma.done [#allocation4], 1024
    $region25: #{tpu_custom_call.1} parent=1 // pred_fallthru
      _
    %361 = vsyncpa [#allocation3], 1
    %362 = vsyncpa [#allocation6], 1
    %363 = vsyncpa [#allocation4], 1

</llo_original>
